<compile_context>
chip_gen: v5e
topology: v5e:2x2
jax: 0.10.0
libtpu: 0.0.40
codegen_flags: <defaults>
</compile_context>

<pallas_src>
import functools

import jax
import jax.numpy as jnp
from jax.experimental import pallas as pl
from jax.experimental.pallas import tpu as pltpu


def _linear_residual_kernel(x_ref, wres_ref, b_ref, o_ref):
    # x_ref   : (tm, D)  input row tile
    # wres_ref: (D,  D)  pre-transposed, residual-folded weight (= w.T - I)
    # b_ref   : (1,  D)  bias row (broadcast over rows)
    # o_ref   : (tm, D)  output tile
    acc = jnp.dot(x_ref[...], wres_ref[...],
                  preferred_element_type=jnp.float32)
    o_ref[...] = (acc + b_ref[...]).astype(o_ref.dtype)


def prepare_params(w, b):
    """One-time parameter prep (run OUTSIDE jit, at init time).

    Folds the residual subtraction into the weight and pre-transposes it so
    the kernel computes   x @ (w.T - I) + b  ==  x @ w.T + b - x
    with a single MXU matmul and no per-call relayout of w.
    """
    d_out, d_in = w.shape
    assert d_out == d_in, "residual `v1 - x` needs out_features == in_features"
    w_res_t = (w - jnp.eye(d_in, dtype=w.dtype)).T      # (in, out)
    return w_res_t, b.reshape(1, d_out)


@functools.partial(jax.jit, static_argnames=("tm",))
def _linear_residual_call(x, w_res_t, b_row, *, tm):
    M, D = x.shape
    grid = (M // tm,)
    itemsize = jnp.dtype(x.dtype).itemsize
    cost = pl.CostEstimate(
        flops=2 * M * D * D,
        transcendentals=0,
        bytes_accessed=(M * D + D * D + D + M * D) * itemsize,
    )
    return pl.pallas_call(
        _linear_residual_kernel,
        out_shape=jax.ShapeDtypeStruct((M, D), x.dtype),
        grid_spec=pltpu.PrefetchScalarGridSpec(
            num_scalar_prefetch=0,
            grid=grid,
            in_specs=[
                pl.BlockSpec((tm, D), lambda i: (i, 0)),   # x row tile
                pl.BlockSpec((D, D), lambda i: (0, 0)),    # resident weight
                pl.BlockSpec((1, D), lambda i: (0, 0)),    # bias row
            ],
            out_specs=pl.BlockSpec((tm, D), lambda i: (i, 0)),
        ),
        compiler_params=pltpu.CompilerParams(
            dimension_semantics=("parallel",),
        ),
        cost_estimate=cost,
    )(x, w_res_t, b_row)


def linear_residual(x, w_res_t, b_row, *, tm=None):
    """out = x @ w.T + b - x, given params prepared by `prepare_params`."""
    M, D = x.shape
    if tm is None:
        # Single grid step when the whole problem fits comfortably in VMEM
        # (overhead-bound regime); otherwise MXU-sized 256-row tiles.
        tm = M if M <= 512 else 256
    assert tm % 8 == 0 and M % tm == 0, "row tile must be a multiple of 8 dividing M"
    assert D % 128 == 0, "feature dim must be lane-aligned (multiple of 128)"
    return _linear_residual_call(x, w_res_t, b_row, tm=tm)


if __name__ == "__main__":
    # Small deterministic shapes consistent with the module's forward:
    # batch M=128 rows, feature dim D=256 (square Linear so `v1 - x` is valid).
    M, D = 128, 256
    key = jax.random.PRNGKey(0)
    kx, kw, kb = jax.random.split(key, 3)

    x = jax.random.normal(kx, (M, D), dtype=jnp.float32)

    # PyTorch-style nn.Linear init: uniform(-1/sqrt(in), 1/sqrt(in)).
    bound = 1.0 / (D ** 0.5)
    w = jax.random.uniform(kw, (D, D), minval=-bound, maxval=bound,
                           dtype=jnp.float32)
    b = jax.random.uniform(kb, (D,), minval=-bound, maxval=bound,
                           dtype=jnp.float32)

    # One-time param prep (outside jit): fold residual, pre-transpose.
    w_res_t, b_row = prepare_params(w, b)

    out = linear_residual(x, w_res_t, b_row)
    out = jax.block_until_ready(out)

    # Reference = the module's literal formula.  The kernel folds the identity
    # into the weight, so under TPU default (bf16-pass) matmul precision its
    # rounding can differ slightly from x @ w.T + b - x; the tolerance below
    # covers that while still catching real bugs.
    ref = x @ w.T + b - x
    assert out.shape == ref.shape == (M, D)
    max_err = float(jnp.max(jnp.abs(out - ref)))
    assert jnp.allclose(out, ref, atol=2e-2, rtol=2e-2), (
        f"mismatch vs reference (max abs err {max_err:.3e})")

    print("KERNEL_OK")
</pallas_src>

<mosaic_0001>
module attributes {stable_mosaic.version = 11 : i64} {
  func.func @_linear_residual_kernel(%arg0: i32, %arg1: memref<128x256xf32, #tpu.memory_space<vmem>>, %arg2: memref<256x256xf32, #tpu.memory_space<vmem>>, %arg3: memref<1x256xf32, #tpu.memory_space<vmem>>, %arg4: memref<128x256xf32, #tpu.memory_space<vmem>>) attributes {dimension_semantics = [#tpu.dimension_semantics<parallel>], iteration_bounds = array<i64: 1>, scalar_prefetch = 0 : i64, scratch_operands = 0 : i64, tpu.core_type = #tpu.core_type<tc>, window_params = [{transform_indices = @transform_0, window_bounds = array<i64: 128, 256>}, {pipeline_mode = #tpu.pipeline_mode<synchronous>, transform_indices = @transform_1, window_bounds = array<i64: 256, 256>}, {pipeline_mode = #tpu.pipeline_mode<synchronous>, transform_indices = @transform_2, window_bounds = array<i64: 1, 256>}, {transform_indices = @transform_3, window_bounds = array<i64: 128, 256>}]} {
    %c0 = arith.constant 0 : index
    %c0_0 = arith.constant 0 : index
    %0 = vector.load %arg1[%c0, %c0_0] : memref<128x256xf32, #tpu.memory_space<vmem>>, vector<128x256xf32>
    %c0_1 = arith.constant 0 : index
    %c0_2 = arith.constant 0 : index
    %1 = vector.load %arg2[%c0_1, %c0_2] : memref<256x256xf32, #tpu.memory_space<vmem>>, vector<256x256xf32>
    %cst = arith.constant dense<0.000000e+00> : vector<128x256xf32>
    %2 = tpu.matmul %0, %1, %cst {dimension_numbers = #tpu.dot_dimension_numbers<[1], [0], [0], [1], [0, 0, 1, 1], [], []>} : vector<128x256xf32>, vector<256x256xf32>, vector<128x256xf32> -> vector<128x256xf32>
    %c0_3 = arith.constant 0 : index
    %c0_4 = arith.constant 0 : index
    %3 = vector.load %arg3[%c0_3, %c0_4] : memref<1x256xf32, #tpu.memory_space<vmem>>, vector<1x256xf32>
    %4 = vector.broadcast %3 : vector<1x256xf32> to vector<128x256xf32>
    %5 = arith.addf %2, %4 : vector<128x256xf32>
    %c0_5 = arith.constant 0 : index
    %c0_6 = arith.constant 0 : index
    %6 = vector.load %arg4[%c0_5, %c0_6] : memref<128x256xf32, #tpu.memory_space<vmem>>, vector<128x256xf32>
    tpu.vector_store %arg4[%c0_5, %c0_6], %5 {strides = array<i32>} : memref<128x256xf32, #tpu.memory_space<vmem>>, vector<128x256xf32>,
    return
  }
  func.func @transform_0(%arg0: i32) -> (i32, i32) {
    %c0_i32 = arith.constant 0 : i32
    %c0_i32_0 = arith.constant 0 : i32
    return %arg0, %c0_i32 : i32, i32
  }
  func.func @transform_1(%arg0: i32) -> (i32, i32) {
    %c0_i32 = arith.constant 0 : i32
    %c0_i32_0 = arith.constant 0 : i32
    %c0_i32_1 = arith.constant 0 : i32
    return %c0_i32, %c0_i32_0 : i32, i32
  }
  func.func @transform_2(%arg0: i32) -> (i32, i32) {
    %c0_i32 = arith.constant 0 : i32
    %c0_i32_0 = arith.constant 0 : i32
    %c0_i32_1 = arith.constant 0 : i32
    return %c0_i32, %c0_i32_0 : i32, i32
  }
  func.func @transform_3(%arg0: i32) -> (i32, i32) {
    %c0_i32 = arith.constant 0 : i32
    %c0_i32_0 = arith.constant 0 : i32
    return %arg0, %c0_i32 : i32, i32
  }
}

</mosaic_0001>

<llo_original>
// kernel: _linear_residual_call.1
$region0: #{_linear_residual_call.1}
  #allocation0 [shape = 'u32[]', space=smem, size = 0x4, offset = 0x4, fixed_abs, tag = 'smem constant byte address 0x4 - core index']
  #allocation1 [shape = 'u32[72,128]{1,0:T(1,128)}', space=vmem, size = 0x9000, scoped, tag = 'internal scratch']
  %s0 = inlined_call_operand.hbm [shape: f32[128,256], index: 0, kind: input, shape index: {}]
  %s1 = inlined_call_operand.hbm [shape: f32[256,256], index: 1, kind: input, shape index: {}]
  %s2 = inlined_call_operand.hbm [shape: f32[1,256], index: 2, kind: input, shape index: {}]
  %s3 = inlined_call_operand.hbm [shape: f32[128,256], index: 3, kind: output, shape index: {}]
  %s4 = sld [smem:[#allocation0]]
  $region34: #{_linear_residual_call.1} parent=0
    _
  %s6 = ssub.s32 1, %s4
  %s7 = scalar_select 0, %s6, %s4
  $region1: #{_linear_residual_call.1} parent=0
    #allocation2 [shape = 'u8[131072]{0}', space=vmem, size = 0x20000, scoped, tag = 'input window, operand 0, single buffered']
    #allocation3 [shape = 's32[1]{0}', space=sflag, size = 0x4, scoped, tag = 'scoped memory for _linear_residual_call.1']
    #allocation4 [shape = 's32[1]{0}', space=sflag, size = 0x4, scoped, tag = 'scoped memory for _linear_residual_call.1']
    #allocation5 [shape = 'u8[262144]{0}', space=vmem, size = 0x40000, scoped, tag = 'input window, operand 1, single buffered']
    #allocation6 [shape = 's32[1]{0}', space=sflag, size = 0x4, scoped, tag = 'scoped memory for _linear_residual_call.1']
    #allocation7 [shape = 'u8[1024]{0}', space=vmem, size = 0x400, scoped, tag = 'input window, operand 2, single buffered']
    #allocation8 [shape = 'u8[131072]{0}', space=vmem, size = 0x20000, scoped, tag = 'output window, operand 0, single buffered']
    %8 = vsyncpa [#allocation3], 0
    %9 = vsyncpa [#allocation6], 0
    %10 = vsyncpa [#allocation4], 0
    // Predicated region
    $region2: #{_linear_residual_call.1} parent=1 // pred_check
      _
    $region3: #{_linear_residual_call.1} parent=1 // pred_check_branch
      %12 = sbr.rel (0) target = $region5
    $region4: #{_linear_residual_call.1} parent=1 // pred_region
      %14 = vsyncadd [#allocation3], 0
      %s15 = sshll.u32 %s0, 4
      %s16 = int_to_ptr.hbm [resolvable:$true] %s15
      %s17 = sshll.u32 [#allocation2], 4
      %s18 = int_to_ptr.vmem [resolvable:$true] %s17
      %23 = dma.hbm_to_vmem [thread:$0]  %s16, 4096, %s18, [#allocation3], 256, 256, 16
    $region5: #{_linear_residual_call.1} parent=1 // pred_fallthru
      _
    // Predicated region
    $region6: #{_linear_residual_call.1} parent=1 // pred_check
      _
    $region7: #{_linear_residual_call.1} parent=1 // pred_check_branch
      %25 = sbr.rel (0) target = $region9
    $region8: #{_linear_residual_call.1} parent=1 // pred_region
      %27 = vsyncadd [#allocation6], 0
      %s28 = sshll.u32 %s1, 4
      %s29 = int_to_ptr.hbm [resolvable:$true] %s28
      %s30 = sshll.u32 [#allocation5], 4
      %s31 = int_to_ptr.vmem [resolvable:$true] %s30
      %36 = dma.hbm_to_vmem [thread:$0]  %s29, 8192, %s31, [#allocation6], 256, 256, 16
    $region9: #{_linear_residual_call.1} parent=1 // pred_fallthru
      _
    // Predicated region
    $region10: #{_linear_residual_call.1} parent=1 // pred_check
      _
    $region11: #{_linear_residual_call.1} parent=1 // pred_check_branch
      %38 = sbr.rel (0) target = $region13
    $region12: #{_linear_residual_call.1} parent=1 // pred_region
      %40 = vsyncadd [#allocation6], 0
      %s42 = sshll.u32 %s2, 4
      %s43 = int_to_ptr.hbm [resolvable:$true] %s42
      %s44 = sshll.u32 [#allocation7], 4
      %s45 = int_to_ptr.vmem [resolvable:$true] %s44
      %47 = dma.hbm_to_vmem [thread:$0]  %s43, 32, %s45, [#allocation6]
    $region13: #{_linear_residual_call.1} parent=1 // pred_fallthru
      _
    // Predicated region
    $region14: #{_linear_residual_call.1} parent=1 // pred_check
      _
    $region15: #{_linear_residual_call.1} parent=1 // pred_check_branch
      %49 = sbr.rel (0) target = $region17
    $region16: #{_linear_residual_call.1} parent=1 // pred_region
      %51 = dma.done [#allocation3], 4096
    $region17: #{_linear_residual_call.1} parent=1 // pred_fallthru
      _
    // Predicated region
    $region18: #{_linear_residual_call.1} parent=1 // pred_check
      _
    $region19: #{_linear_residual_call.1} parent=1 // pred_check_branch
      %53 = sbr.rel (0) target = $region21
    $region20: #{_linear_residual_call.1} parent=1 // pred_region
      %55 = dma.done [#allocation6], 8192
    $region21: #{_linear_residual_call.1} parent=1 // pred_fallthru
      _
    // Predicated region
    $region22: #{_linear_residual_call.1} parent=1 // pred_check
      _
    $region23: #{_linear_residual_call.1} parent=1 // pred_check_branch
      %57 = sbr.rel (0) target = $region25
    $region24: #{_linear_residual_call.1} parent=1 // pred_region
      %59 = dma.done [#allocation6], 32
    $region25: #{_linear_residual_call.1} parent=1 // pred_fallthru
      _
    %v60 = vld [vmem:[#allocation2] sm:$0xff]
    %v61 = vld [vmem:[#allocation2 + $0x8] sm:$0xff]
    %v62 = vld [vmem:[#allocation2 + $0x10] sm:$0xff]
    %v63 = vld [vmem:[#allocation2 + $0x18] sm:$0xff]
    %v64 = vld [vmem:[#allocation2 + $0x20] sm:$0xff]
    %v65 = vld [vmem:[#allocation2 + $0x28] sm:$0xff]
    %v66 = vld [vmem:[#allocation2 + $0x30] sm:$0xff]
    %v67 = vld [vmem:[#allocation2 + $0x38] sm:$0xff]
    %v68 = vld [vmem:[#allocation2 + $0x40] sm:$0xff]
    %v69 = vld [vmem:[#allocation2 + $0x48] sm:$0xff]
    %v70 = vld [vmem:[#allocation2 + $0x50] sm:$0xff]
    %v71 = vld [vmem:[#allocation2 + $0x58] sm:$0xff]
    %v72 = vld [vmem:[#allocation2 + $0x60] sm:$0xff]
    %v73 = vld [vmem:[#allocation2 + $0x68] sm:$0xff]
    %v74 = vld [vmem:[#allocation2 + $0x70] sm:$0xff]
    %v75 = vld [vmem:[#allocation2 + $0x78] sm:$0xff]
    %v76 = vld [vmem:[#allocation2 + $0x80] sm:$0xff]
    %v77 = vld [vmem:[#allocation2 + $0x88] sm:$0xff]
    %v78 = vld [vmem:[#allocation2 + $0x90] sm:$0xff]
    %v79 = vld [vmem:[#allocation2 + $0x98] sm:$0xff]
    %v80 = vld [vmem:[#allocation2 + $0xa0] sm:$0xff]
    %v81 = vld [vmem:[#allocation2 + $0xa8] sm:$0xff]
    %v82 = vld [vmem:[#allocation2 + $0xb0] sm:$0xff]
    %v83 = vld [vmem:[#allocation2 + $0xb8] sm:$0xff]
    %v84 = vld [vmem:[#allocation2 + $0xc0] sm:$0xff]
    %v85 = vld [vmem:[#allocation2 + $0xc8] sm:$0xff]
    %v86 = vld [vmem:[#allocation2 + $0xd0] sm:$0xff]
    %v87 = vld [vmem:[#allocation2 + $0xd8] sm:$0xff]
    %v88 = vld [vmem:[#allocation2 + $0xe0] sm:$0xff]
    %v89 = vld [vmem:[#allocation2 + $0xe8] sm:$0xff]
    %v90 = vld [vmem:[#allocation2 + $0xf0] sm:$0xff]
    %v91 = vld [vmem:[#allocation2 + $0xf8] sm:$0xff]
    %v92 = vld [vmem:[#allocation5] sm:$0xff]
    %v93 = vld [vmem:[#allocation5 + $0x8] sm:$0xff]
    %v94 = vld [vmem:[#allocation5 + $0x10] sm:$0xff]
    %v95 = vld [vmem:[#allocation5 + $0x18] sm:$0xff]
    %v96 = vld [vmem:[#allocation5 + $0x20] sm:$0xff]
    %v97 = vld [vmem:[#allocation5 + $0x28] sm:$0xff]
    %v98 = vld [vmem:[#allocation5 + $0x30] sm:$0xff]
    %v99 = vld [vmem:[#allocation5 + $0x38] sm:$0xff]
    %v100 = vld [vmem:[#allocation5 + $0x40] sm:$0xff]
    %v101 = vld [vmem:[#allocation5 + $0x48] sm:$0xff]
    %v102 = vld [vmem:[#allocation5 + $0x50] sm:$0xff]
    %v103 = vld [vmem:[#allocation5 + $0x58] sm:$0xff]
    %v104 = vld [vmem:[#allocation5 + $0x60] sm:$0xff]
    %v105 = vld [vmem:[#allocation5 + $0x68] sm:$0xff]
    %v106 = vld [vmem:[#allocation5 + $0x70] sm:$0xff]
    %v107 = vld [vmem:[#allocation5 + $0x78] sm:$0xff]
    %v108 = vld [vmem:[#allocation5 + $0x80] sm:$0xff]
    %v109 = vld [vmem:[#allocation5 + $0x88] sm:$0xff]
    %v110 = vld [vmem:[#allocation5 + $0x90] sm:$0xff]
    %v111 = vld [vmem:[#allocation5 + $0x98] sm:$0xff]
    %v112 = vld [vmem:[#allocation5 + $0xa0] sm:$0xff]
    %v113 = vld [vmem:[#allocation5 + $0xa8] sm:$0xff]
    %v114 = vld [vmem:[#allocation5 + $0xb0] sm:$0xff]
    %v115 = vld [vmem:[#allocation5 + $0xb8] sm:$0xff]
    %v116 = vld [vmem:[#allocation5 + $0xc0] sm:$0xff]
    %v117 = vld [vmem:[#allocation5 + $0xc8] sm:$0xff]
    %v118 = vld [vmem:[#allocation5 + $0xd0] sm:$0xff]
    %v119 = vld [vmem:[#allocation5 + $0xd8] sm:$0xff]
    %v120 = vld [vmem:[#allocation5 + $0xe0] sm:$0xff]
    %v121 = vld [vmem:[#allocation5 + $0xe8] sm:$0xff]
    %v122 = vld [vmem:[#allocation5 + $0xf0] sm:$0xff]
    %v123 = vld [vmem:[#allocation5 + $0xf8] sm:$0xff]
    %v124 = vld [vmem:[#allocation5 + $0x100] sm:$0xff]
    %v125 = vld [vmem:[#allocation5 + $0x108] sm:$0xff]
    %v126 = vld [vmem:[#allocation5 + $0x110] sm:$0xff]
    %v127 = vld [vmem:[#allocation5 + $0x118] sm:$0xff]
    %v128 = vld [vmem:[#allocation5 + $0x120] sm:$0xff]
    %v129 = vld [vmem:[#allocation5 + $0x128] sm:$0xff]
    %v130 = vld [vmem:[#allocation5 + $0x130] sm:$0xff]
    %v131 = vld [vmem:[#allocation5 + $0x138] sm:$0xff]
    %v132 = vld [vmem:[#allocation5 + $0x140] sm:$0xff]
    %v133 = vld [vmem:[#allocation5 + $0x148] sm:$0xff]
    %v134 = vld [vmem:[#allocation5 + $0x150] sm:$0xff]
    %v135 = vld [vmem:[#allocation5 + $0x158] sm:$0xff]
    %v136 = vld [vmem:[#allocation5 + $0x160] sm:$0xff]
    %v137 = vld [vmem:[#allocation5 + $0x168] sm:$0xff]
    %v138 = vld [vmem:[#allocation5 + $0x170] sm:$0xff]
    %v139 = vld [vmem:[#allocation5 + $0x178] sm:$0xff]
    %v140 = vld [vmem:[#allocation5 + $0x180] sm:$0xff]
    %v141 = vld [vmem:[#allocation5 + $0x188] sm:$0xff]
    %v142 = vld [vmem:[#allocation5 + $0x190] sm:$0xff]
    %v143 = vld [vmem:[#allocation5 + $0x198] sm:$0xff]
    %v144 = vld [vmem:[#allocation5 + $0x1a0] sm:$0xff]
    %v145 = vld [vmem:[#allocation5 + $0x1a8] sm:$0xff]
    %v146 = vld [vmem:[#allocation5 + $0x1b0] sm:$0xff]
    %v147 = vld [vmem:[#allocation5 + $0x1b8] sm:$0xff]
    %v148 = vld [vmem:[#allocation5 + $0x1c0] sm:$0xff]
    %v149 = vld [vmem:[#allocation5 + $0x1c8] sm:$0xff]
    %v150 = vld [vmem:[#allocation5 + $0x1d0] sm:$0xff]
    %v151 = vld [vmem:[#allocation5 + $0x1d8] sm:$0xff]
    %v152 = vld [vmem:[#allocation5 + $0x1e0] sm:$0xff]
    %v153 = vld [vmem:[#allocation5 + $0x1e8] sm:$0xff]
    %v154 = vld [vmem:[#allocation5 + $0x1f0] sm:$0xff]
    %v155 = vld [vmem:[#allocation5 + $0x1f8] sm:$0xff]
    %v156 = vld [vmem:[#allocation7] sm:$0x3]
    %v158 = vperm.slane %v156, 0
    %v159 = vperm.slane %v156, 1
    %162 = vmatpush.msra.mxu0 %v122
    %163 = vmatpush.msra.mxu0 %v120
    %164 = vmatpush.msra.mxu0 %v118
    %165 = vmatpush.msra.mxu0 %v116
    %166 = vmatpush.msra.mxu0 %v114
    %167 = vmatpush.msra.mxu0 %v112
    %168 = vmatpush.msra.mxu0 %v110
    %169 = vmatpush.msra.mxu0 %v108
    %170 = vmatpush.msra.mxu0 %v106
    %171 = vmatpush.msra.mxu0 %v104
    %172 = vmatpush.msra.mxu0 %v102
    %173 = vmatpush.msra.mxu0 %v100
    %174 = vmatpush.msra.mxu0 %v98
    %175 = vmatpush.msra.mxu0 %v96
    %176 = vmatpush.msra.mxu0 %v94
    %177 = vmatpush.msra.mxu0 %v92
    %178 = vmatmul.f32.gmra.mxu0 %v60
    %v179 = vpop.f32.mrf.mxu0
    %v180 = vadd.f32 %v158, %v179
    %181 = vmatmul.f32.gmra.mxu0 %v62
    %v182 = vpop.f32.mrf.mxu0
    %v183 = vadd.f32 %v158, %v182
    %184 = vmatmul.f32.gmra.mxu0 %v64
    %v185 = vpop.f32.mrf.mxu0
    %v186 = vadd.f32 %v158, %v185
    %187 = vmatmul.f32.gmra.mxu0 %v66
    %v188 = vpop.f32.mrf.mxu0
    %v189 = vadd.f32 %v158, %v188
    %190 = vmatmul.f32.gmra.mxu0 %v68
    %v191 = vpop.f32.mrf.mxu0
    %v192 = vadd.f32 %v158, %v191
    %193 = vmatmul.f32.gmra.mxu0 %v70
    %v194 = vpop.f32.mrf.mxu0
    %v195 = vadd.f32 %v158, %v194
    %196 = vmatmul.f32.gmra.mxu0 %v72
    %v197 = vpop.f32.mrf.mxu0
    %v198 = vadd.f32 %v158, %v197
    %199 = vmatmul.f32.gmra.mxu0 %v74
    %v200 = vpop.f32.mrf.mxu0
    %v201 = vadd.f32 %v158, %v200
    %202 = vmatmul.f32.gmra.mxu0 %v76
    %v203 = vpop.f32.mrf.mxu0
    %v204 = vadd.f32 %v158, %v203
    %205 = vmatmul.f32.gmra.mxu0 %v78
    %v206 = vpop.f32.mrf.mxu0
    %v207 = vadd.f32 %v158, %v206
    %208 = vmatmul.f32.gmra.mxu0 %v80
    %v209 = vpop.f32.mrf.mxu0
    %v210 = vadd.f32 %v158, %v209
    %211 = vmatmul.f32.gmra.mxu0 %v82
    %v212 = vpop.f32.mrf.mxu0
    %v213 = vadd.f32 %v158, %v212
    %214 = vmatmul.f32.gmra.mxu0 %v84
    %v215 = vpop.f32.mrf.mxu0
    %v216 = vadd.f32 %v158, %v215
    %217 = vmatmul.f32.gmra.mxu0 %v86
    %v218 = vpop.f32.mrf.mxu0
    %v219 = vadd.f32 %v158, %v218
    %220 = vmatmul.f32.gmra.mxu0 %v88
    %v221 = vpop.f32.mrf.mxu0
    %v222 = vadd.f32 %v158, %v221
    %223 = vmatmul.f32.gmra.mxu0 %v90
    %v224 = vpop.f32.mrf.mxu0
    %v225 = vadd.f32 %v158, %v224
    %226 = vdwg.mxu0
    %227 = vmatpush.msra.mxu0 %v154
    %228 = vmatpush.msra.mxu0 %v152
    %229 = vmatpush.msra.mxu0 %v150
    %230 = vmatpush.msra.mxu0 %v148
    %231 = vmatpush.msra.mxu0 %v146
    %232 = vmatpush.msra.mxu0 %v144
    %233 = vmatpush.msra.mxu0 %v142
    %234 = vmatpush.msra.mxu0 %v140
    %235 = vmatpush.msra.mxu0 %v138
    %236 = vmatpush.msra.mxu0 %v136
    %237 = vmatpush.msra.mxu0 %v134
    %238 = vmatpush.msra.mxu0 %v132
    %239 = vmatpush.msra.mxu0 %v130
    %240 = vmatpush.msra.mxu0 %v128
    %241 = vmatpush.msra.mxu0 %v126
    %242 = vmatpush.msra.mxu0 %v124
    %243 = vmatmul.f32.gmra.mxu0 %v61
    %v244 = vpop.f32.mrf.mxu0
    %v245 = vadd.f32 %v180, %v244
    %246 = vmatmul.f32.gmra.mxu0 %v63
    %v247 = vpop.f32.mrf.mxu0
    %v248 = vadd.f32 %v183, %v247
    %249 = vmatmul.f32.gmra.mxu0 %v65
    %v250 = vpop.f32.mrf.mxu0
    %v251 = vadd.f32 %v186, %v250
    %252 = vmatmul.f32.gmra.mxu0 %v67
    %v253 = vpop.f32.mrf.mxu0
    %v254 = vadd.f32 %v189, %v253
    %255 = vmatmul.f32.gmra.mxu0 %v69
    %v256 = vpop.f32.mrf.mxu0
    %v257 = vadd.f32 %v192, %v256
    %258 = vmatmul.f32.gmra.mxu0 %v71
    %v259 = vpop.f32.mrf.mxu0
    %v260 = vadd.f32 %v195, %v259
    %261 = vmatmul.f32.gmra.mxu0 %v73
    %v262 = vpop.f32.mrf.mxu0
    %v263 = vadd.f32 %v198, %v262
    %264 = vmatmul.f32.gmra.mxu0 %v75
    %v265 = vpop.f32.mrf.mxu0
    %v266 = vadd.f32 %v201, %v265
    %267 = vmatmul.f32.gmra.mxu0 %v77
    %v268 = vpop.f32.mrf.mxu0
    %v269 = vadd.f32 %v204, %v268
    %270 = vmatmul.f32.gmra.mxu0 %v79
    %v271 = vpop.f32.mrf.mxu0
    %v272 = vadd.f32 %v207, %v271
    %273 = vmatmul.f32.gmra.mxu0 %v81
    %v274 = vpop.f32.mrf.mxu0
    %v275 = vadd.f32 %v210, %v274
    %276 = vmatmul.f32.gmra.mxu0 %v83
    %v277 = vpop.f32.mrf.mxu0
    %v278 = vadd.f32 %v213, %v277
    %279 = vmatmul.f32.gmra.mxu0 %v85
    %v280 = vpop.f32.mrf.mxu0
    %v281 = vadd.f32 %v216, %v280
    %282 = vmatmul.f32.gmra.mxu0 %v87
    %v283 = vpop.f32.mrf.mxu0
    %v284 = vadd.f32 %v219, %v283
    %285 = vmatmul.f32.gmra.mxu0 %v89
    %v286 = vpop.f32.mrf.mxu0
    %v287 = vadd.f32 %v222, %v286
    %288 = vmatmul.f32.gmra.mxu0 %v91
    %v289 = vpop.f32.mrf.mxu0
    %v290 = vadd.f32 %v225, %v289
    %291 = vdwg.mxu0
    %292 = vmatpush.msra.mxu0 %v123
    %293 = vmatpush.msra.mxu0 %v121
    %294 = vmatpush.msra.mxu0 %v119
    %295 = vmatpush.msra.mxu0 %v117
    %296 = vmatpush.msra.mxu0 %v115
    %297 = vmatpush.msra.mxu0 %v113
    %298 = vmatpush.msra.mxu0 %v111
    %299 = vmatpush.msra.mxu0 %v109
    %300 = vmatpush.msra.mxu0 %v107
    %301 = vmatpush.msra.mxu0 %v105
    %302 = vmatpush.msra.mxu0 %v103
    %303 = vmatpush.msra.mxu0 %v101
    %304 = vmatpush.msra.mxu0 %v99
    %305 = vmatpush.msra.mxu0 %v97
    %306 = vmatpush.msra.mxu0 %v95
    %307 = vmatpush.msra.mxu0 %v93
    %308 = vmatmul.f32.gmra.mxu0 %v60
    %v309 = vpop.f32.mrf.mxu0
    %v310 = vadd.f32 %v159, %v309
    %311 = vmatmul.f32.gmra.mxu0 %v62
    %v312 = vpop.f32.mrf.mxu0
    %v313 = vadd.f32 %v159, %v312
    %314 = vmatmul.f32.gmra.mxu0 %v64
    %v315 = vpop.f32.mrf.mxu0
    %v316 = vadd.f32 %v159, %v315
    %317 = vmatmul.f32.gmra.mxu0 %v66
    %v318 = vpop.f32.mrf.mxu0
    %v319 = vadd.f32 %v159, %v318
    %320 = vmatmul.f32.gmra.mxu0 %v68
    %v321 = vpop.f32.mrf.mxu0
    %v322 = vadd.f32 %v159, %v321
    %323 = vmatmul.f32.gmra.mxu0 %v70
    %v324 = vpop.f32.mrf.mxu0
    %v325 = vadd.f32 %v159, %v324
    %326 = vmatmul.f32.gmra.mxu0 %v72
    %v327 = vpop.f32.mrf.mxu0
    %v328 = vadd.f32 %v159, %v327
    %329 = vmatmul.f32.gmra.mxu0 %v74
    %v330 = vpop.f32.mrf.mxu0
    %v331 = vadd.f32 %v159, %v330
    %332 = vmatmul.f32.gmra.mxu0 %v76
    %v333 = vpop.f32.mrf.mxu0
    %v334 = vadd.f32 %v159, %v333
    %335 = vmatmul.f32.gmra.mxu0 %v78
    %v336 = vpop.f32.mrf.mxu0
    %v337 = vadd.f32 %v159, %v336
    %338 = vmatmul.f32.gmra.mxu0 %v80
    %v339 = vpop.f32.mrf.mxu0
    %v340 = vadd.f32 %v159, %v339
    %341 = vmatmul.f32.gmra.mxu0 %v82
    %v342 = vpop.f32.mrf.mxu0
    %v343 = vadd.f32 %v159, %v342
    %344 = vmatmul.f32.gmra.mxu0 %v84
    %v345 = vpop.f32.mrf.mxu0
    %v346 = vadd.f32 %v159, %v345
    %347 = vmatmul.f32.gmra.mxu0 %v86
    %v348 = vpop.f32.mrf.mxu0
    %v349 = vadd.f32 %v159, %v348
    %350 = vmatmul.f32.gmra.mxu0 %v88
    %v351 = vpop.f32.mrf.mxu0
    %v352 = vadd.f32 %v159, %v351
    %353 = vmatmul.f32.gmra.mxu0 %v90
    %v354 = vpop.f32.mrf.mxu0
    %v355 = vadd.f32 %v159, %v354
    %356 = vdwg.mxu0
    %357 = vmatpush.msra.mxu0 %v155
    %358 = vmatpush.msra.mxu0 %v153
    %359 = vmatpush.msra.mxu0 %v151
    %360 = vmatpush.msra.mxu0 %v149
    %361 = vmatpush.msra.mxu0 %v147
    %362 = vmatpush.msra.mxu0 %v145
    %363 = vmatpush.msra.mxu0 %v143
    %364 = vmatpush.msra.mxu0 %v141
    %365 = vmatpush.msra.mxu0 %v139
    %366 = vmatpush.msra.mxu0 %v137
    %367 = vmatpush.msra.mxu0 %v135
    %368 = vmatpush.msra.mxu0 %v133
    %369 = vmatpush.msra.mxu0 %v131
    %370 = vmatpush.msra.mxu0 %v129
    %371 = vmatpush.msra.mxu0 %v127
    %372 = vmatpush.msra.mxu0 %v125
    %373 = vmatmul.f32.gmra.mxu0 %v61
    %v374 = vpop.f32.mrf.mxu0
    %v375 = vadd.f32 %v310, %v374
    %376 = vmatmul.f32.gmra.mxu0 %v63
    %v377 = vpop.f32.mrf.mxu0
    %v378 = vadd.f32 %v313, %v377
    %379 = vmatmul.f32.gmra.mxu0 %v65
    %v380 = vpop.f32.mrf.mxu0
    %v381 = vadd.f32 %v316, %v380
    %382 = vmatmul.f32.gmra.mxu0 %v67
    %v383 = vpop.f32.mrf.mxu0
    %v384 = vadd.f32 %v319, %v383
    %385 = vmatmul.f32.gmra.mxu0 %v69
    %v386 = vpop.f32.mrf.mxu0
    %v387 = vadd.f32 %v322, %v386
    %388 = vmatmul.f32.gmra.mxu0 %v71
    %v389 = vpop.f32.mrf.mxu0
    %v390 = vadd.f32 %v325, %v389
    %391 = vmatmul.f32.gmra.mxu0 %v73
    %v392 = vpop.f32.mrf.mxu0
    %v393 = vadd.f32 %v328, %v392
    %394 = vmatmul.f32.gmra.mxu0 %v75
    %v395 = vpop.f32.mrf.mxu0
    %v396 = vadd.f32 %v331, %v395
    %397 = vmatmul.f32.gmra.mxu0 %v77
    %v398 = vpop.f32.mrf.mxu0
    %v399 = vadd.f32 %v334, %v398
    %400 = vmatmul.f32.gmra.mxu0 %v79
    %v401 = vpop.f32.mrf.mxu0
    %v402 = vadd.f32 %v337, %v401
    %403 = vmatmul.f32.gmra.mxu0 %v81
    %v404 = vpop.f32.mrf.mxu0
    %v405 = vadd.f32 %v340, %v404
    %406 = vmatmul.f32.gmra.mxu0 %v83
    %v407 = vpop.f32.mrf.mxu0
    %v408 = vadd.f32 %v343, %v407
    %409 = vmatmul.f32.gmra.mxu0 %v85
    %v410 = vpop.f32.mrf.mxu0
    %v411 = vadd.f32 %v346, %v410
    %412 = vmatmul.f32.gmra.mxu0 %v87
    %v413 = vpop.f32.mrf.mxu0
    %v414 = vadd.f32 %v349, %v413
    %415 = vmatmul.f32.gmra.mxu0 %v89
    %v416 = vpop.f32.mrf.mxu0
    %v417 = vadd.f32 %v352, %v416
    %418 = vmatmul.f32.gmra.mxu0 %v91
    %v419 = vpop.f32.mrf.mxu0
    %v420 = vadd.f32 %v355, %v419
    %421 = vdwg.mxu0
    %422 = vst [vmem:[#allocation8] sm:$0xff] %v245
    %423 = vst [vmem:[#allocation8 + $0x8] sm:$0xff] %v375
    %424 = vst [vmem:[#allocation8 + $0x10] sm:$0xff] %v248
    %425 = vst [vmem:[#allocation8 + $0x18] sm:$0xff] %v378
    %426 = vst [vmem:[#allocation8 + $0x20] sm:$0xff] %v251
    %427 = vst [vmem:[#allocation8 + $0x28] sm:$0xff] %v381
    %428 = vst [vmem:[#allocation8 + $0x30] sm:$0xff] %v254
    %429 = vst [vmem:[#allocation8 + $0x38] sm:$0xff] %v384
    %430 = vst [vmem:[#allocation8 + $0x40] sm:$0xff] %v257
    %431 = vst [vmem:[#allocation8 + $0x48] sm:$0xff] %v387
    %432 = vst [vmem:[#allocation8 + $0x50] sm:$0xff] %v260
    %433 = vst [vmem:[#allocation8 + $0x58] sm:$0xff] %v390
    %434 = vst [vmem:[#allocation8 + $0x60] sm:$0xff] %v263
    %435 = vst [vmem:[#allocation8 + $0x68] sm:$0xff] %v393
    %436 = vst [vmem:[#allocation8 + $0x70] sm:$0xff] %v266
    %437 = vst [vmem:[#allocation8 + $0x78] sm:$0xff] %v396
    %438 = vst [vmem:[#allocation8 + $0x80] sm:$0xff] %v269
    %439 = vst [vmem:[#allocation8 + $0x88] sm:$0xff] %v399
    %440 = vst [vmem:[#allocation8 + $0x90] sm:$0xff] %v272
    %441 = vst [vmem:[#allocation8 + $0x98] sm:$0xff] %v402
    %442 = vst [vmem:[#allocation8 + $0xa0] sm:$0xff] %v275
    %443 = vst [vmem:[#allocation8 + $0xa8] sm:$0xff] %v405
    %444 = vst [vmem:[#allocation8 + $0xb0] sm:$0xff] %v278
    %445 = vst [vmem:[#allocation8 + $0xb8] sm:$0xff] %v408
    %446 = vst [vmem:[#allocation8 + $0xc0] sm:$0xff] %v281
    %447 = vst [vmem:[#allocation8 + $0xc8] sm:$0xff] %v411
    %448 = vst [vmem:[#allocation8 + $0xd0] sm:$0xff] %v284
    %449 = vst [vmem:[#allocation8 + $0xd8] sm:$0xff] %v414
    %450 = vst [vmem:[#allocation8 + $0xe0] sm:$0xff] %v287
    %451 = vst [vmem:[#allocation8 + $0xe8] sm:$0xff] %v417
    %452 = vst [vmem:[#allocation8 + $0xf0] sm:$0xff] %v290
    %453 = vst [vmem:[#allocation8 + $0xf8] sm:$0xff] %v420
    // Predicated region
    $region26: #{_linear_residual_call.1} parent=1 // pred_check
      _
    $region27: #{_linear_residual_call.1} parent=1 // pred_check_branch
      %455 = sbr.rel (0) target = $region29
    $region28: #{_linear_residual_call.1} parent=1 // pred_region
      %457 = vsyncadd [#allocation4], 0
      %s458 = sshll.u32 [#allocation8], 4
      %s459 = int_to_ptr.vmem [resolvable:$true] %s458
      %s460 = sshll.u32 %s3, 4
      %s461 = int_to_ptr.hbm [resolvable:$true] %s460
      %466 = dma.vmem_to_hbm [thread:$0]  %s459, 4096, %s461, [#allocation4], 256, 256, 16
    $region29: #{_linear_residual_call.1} parent=1 // pred_fallthru
      _
    // Predicated region
    $region30: #{_linear_residual_call.1} parent=1 // pred_check
      _
    $region31: #{_linear_residual_call.1} parent=1 // pred_check_branch
      %468 = sbr.rel (0) target = $region33
    $region32: #{_linear_residual_call.1} parent=1 // pred_region
      %470 = dma.done [#allocation4], 4096
    $region33: #{_linear_residual_call.1} parent=1 // pred_fallthru
      _
    %471 = vsyncpa [#allocation3], 1
    %472 = vsyncpa [#allocation6], 1
    %473 = vsyncpa [#allocation4], 1

</llo_original>
